<compile_context>
chip_gen: v5e
topology: v5e:2x2
jax: 0.10.0
libtpu: 0.0.40
codegen_flags: <defaults>
</compile_context>

<pallas_src>
import functools
import math

import jax
import jax.numpy as jnp
import numpy as np
from jax import lax
from jax.experimental import pallas as pl
from jax.experimental.pallas import tpu as pltpu

SQRT2_OVER_4 = math.sqrt(2.0) / 4.0
INV_SQRT2_OVER_4 = 1.0 / SQRT2_OVER_4       # = 2 * sqrt(2)
EPS = 1e-5


def _layernorm_d8_kernel(x0_ref, x1_ref, x2_ref, x3_ref, x4_ref, p_ref,
                         y0_ref, y1_ref, y2_ref, y3_ref, y4_ref,
                         *, C8, C4, eps):
    x0 = x0_ref[...].astype(jnp.float32)
    x1 = x1_ref[...].astype(jnp.float32)
    x2 = x2_ref[...].astype(jnp.float32)
    x3 = x3_ref[...].astype(jnp.float32)
    x4 = x4_ref[...].astype(jnp.float32)      # (TR, 2*C4) lane-dense E irrep

    def center_var(x):
        m = jnp.mean(x, axis=-1, keepdims=True)
        d = x - m
        v = jnp.mean(d * d, axis=-1, keepdims=True)   # biased (unbiased=False)
        return d, v

    d0, v0 = center_var(x0)
    d1, v1 = center_var(x1)
    d2, v2 = center_var(x2)
    d3, v3 = center_var(x3)
    d4a, v4a = center_var(x4[:, :C4])          # E-irrep half 0
    d4b, v4b = center_var(x4[:, C4:])          # E-irrep half 1
    v4m = 0.5 * (v4a + v4b)                    # torch.mean(var, dim=-2)

    # inv = 1 / (SQRT2_OVER_4 * sqrt(sum + eps)); rsqrt lowers to the EUP slot.
    inv = INV_SQRT2_OVER_4 * lax.rsqrt(v0 + v1 + v2 + v3 + v4m + eps)

    # packed params: [a1 | a2 | b1 | b2 | beta | ae | ae]
    p = p_ref[...]                             # (1, 5*C8 + 2*C4), fp32
    a1 = p[:, 0 * C8:1 * C8]
    a2 = p[:, 1 * C8:2 * C8]
    b1 = p[:, 2 * C8:3 * C8]
    b2 = p[:, 3 * C8:4 * C8]
    beta = p[:, 4 * C8:5 * C8]
    ae2 = p[:, 5 * C8:5 * C8 + 2 * C4]

    y0_ref[...] = (a1 * (d0 * inv) + beta).astype(y0_ref.dtype)
    y1_ref[...] = (a2 * (d1 * inv)).astype(y1_ref.dtype)
    y2_ref[...] = (b1 * (d2 * inv)).astype(y2_ref.dtype)
    y3_ref[...] = (b2 * (d3 * inv)).astype(y3_ref.dtype)
    y4_ref[...] = (ae2 * (jnp.concatenate([d4a, d4b], axis=-1) * inv)
                   ).astype(y4_ref.dtype)


def _default_tile_rows(R, channels, itemsize):
    # Per row, per grid step: (in + out) * double-buffer = 4 * channels elems.
    bytes_per_row = 4 * channels * max(int(itemsize), 1)
    budget = 12 * 1024 * 1024                  # headroom under 32 MiB scoped VMEM
    tr = budget // bytes_per_row
    tr = max(8, min(1024, (tr // 8) * 8))      # sublane-aligned, capped at 1024
    r8 = ((R + 7) // 8) * 8                    # no point exceeding the problem
    return int(max(8, min(tr, r8)))


def layernorm_d8(xs, params, *, eps=EPS, tile_rows=None):
    """xs = (x0,x1,x2,x3,x4) with x0..x3: (..., C8), x4: (..., 2, C4).

    params = (a1, a2, b1, b2, ae, beta); pass ones/zeros for the
    elementwise_affine=False / bias=False variants.
    """
    x0, x1, x2, x3, x4 = xs
    a1, a2, b1, b2, ae, beta = params

    lead = x0.shape[:-1]
    C8 = x0.shape[-1]
    K, C4 = x4.shape[-2], x4.shape[-1]
    channels = 8 * C8
    R = int(np.prod(lead)) if lead else 1

    # Glue: flatten leading dims; x4 becomes a lane-dense (R, 2*C4) slab.
    x0f = x0.reshape(R, C8)
    x1f = x1.reshape(R, C8)
    x2f = x2.reshape(R, C8)
    x3f = x3.reshape(R, C8)
    x4f = x4.reshape(R, K * C4)

    if tile_rows is None:
        tile_rows = _default_tile_rows(R, channels, jnp.dtype(x0.dtype).itemsize)
    tile_rows = max(8, (int(tile_rows) // 8) * 8)

    grid = (pl.cdiv(R, tile_rows),)

    # One packed parameter slab: [a1, a2, b1, b2, beta, ae, ae].
    p = jnp.concatenate([
        a1.astype(jnp.float32), a2.astype(jnp.float32),
        b1.astype(jnp.float32), b2.astype(jnp.float32),
        beta.astype(jnp.float32),
        ae.astype(jnp.float32), ae.astype(jnp.float32),
    ]).reshape(1, -1)
    P = p.shape[-1]

    row_spec = pl.BlockSpec((tile_rows, C8), lambda i: (i, 0))
    e_spec = pl.BlockSpec((tile_rows, K * C4), lambda i: (i, 0))
    p_spec = pl.BlockSpec((1, P), lambda i: (0, 0))

    out_shape = (
        jax.ShapeDtypeStruct((R, C8), x0.dtype),
        jax.ShapeDtypeStruct((R, C8), x1.dtype),
        jax.ShapeDtypeStruct((R, C8), x2.dtype),
        jax.ShapeDtypeStruct((R, C8), x3.dtype),
        jax.ShapeDtypeStruct((R, K * C4), x4.dtype),
    )

    kernel = functools.partial(_layernorm_d8_kernel, C8=C8, C4=C4, eps=eps)

    outs = pl.pallas_call(
        kernel,
        out_shape=out_shape,
        grid=grid,
        in_specs=[row_spec, row_spec, row_spec, row_spec, e_spec, p_spec],
        out_specs=[row_spec, row_spec, row_spec, row_spec, e_spec],
        compiler_params=pltpu.CompilerParams(
            dimension_semantics=("parallel",),
            vmem_limit_bytes=32 * 1024 * 1024),
    )(x0f, x1f, x2f, x3f, x4f, p)

    y0, y1, y2, y3, y4f = outs
    return (y0.reshape(*lead, C8), y1.reshape(*lead, C8),
            y2.reshape(*lead, C8), y3.reshape(*lead, C8),
            y4f.reshape(*lead, K, C4))


def layernorm_d8_reference(xs, params, eps=EPS):
    """Pure-JAX mirror of the PyTorch forward (for verification)."""
    x0, x1, x2, x3, x4 = xs
    a1, a2, b1, b2, ae, beta = params

    def var(x):
        return jnp.var(x, axis=-1, keepdims=True)

    std = SQRT2_OVER_4 * jnp.sqrt(
        var(x0) + var(x1) + var(x2) + var(x3)
        + jnp.mean(var(x4), axis=-2) + eps)
    n0 = (x0 - x0.mean(-1, keepdims=True)) / std
    n1 = (x1 - x1.mean(-1, keepdims=True)) / std
    n2 = (x2 - x2.mean(-1, keepdims=True)) / std
    n3 = (x3 - x3.mean(-1, keepdims=True)) / std
    n4 = (x4 - x4.mean(-1, keepdims=True)) / std[..., None]
    return (a1 * n0 + beta, a2 * n1, b1 * n2, b2 * n3, ae * n4)


def _make_case(key, B, N, channels):
    C8, C4 = channels // 8, channels // 4
    k = jax.random.split(key, 11)
    x0 = jax.random.normal(k[0], (B, N, C8), jnp.float32)
    x1 = jax.random.normal(k[1], (B, N, C8), jnp.float32)
    x2 = jax.random.normal(k[2], (B, N, C8), jnp.float32)
    x3 = jax.random.normal(k[3], (B, N, C8), jnp.float32)
    x4 = jax.random.normal(k[4], (B, N, 2, C4), jnp.float32)
    a1 = 1.0 + 0.1 * jax.random.normal(k[5], (C8,), jnp.float32)
    a2 = 1.0 + 0.1 * jax.random.normal(k[6], (C8,), jnp.float32)
    b1 = 1.0 + 0.1 * jax.random.normal(k[7], (C8,), jnp.float32)
    b2 = 1.0 + 0.1 * jax.random.normal(k[8], (C8,), jnp.float32)
    ae = 1.0 + 0.1 * jax.random.normal(k[9], (C4,), jnp.float32)
    beta = 0.1 * jax.random.normal(k[10], (C8,), jnp.float32)
    return (x0, x1, x2, x3, x4), (a1, a2, b1, b2, ae, beta)


if __name__ == "__main__":
    key = jax.random.PRNGKey(0)
    k1, k2 = jax.random.split(key)

    # Case 1: small, exactly-tiled shapes (B=2, N=8, channels=32).
    xs, params = _make_case(k1, B=2, N=8, channels=32)
    out = jax.block_until_ready(layernorm_d8(xs, params))
    ref = layernorm_d8_reference(xs, params)
    for o, r in zip(out, ref):
        np.testing.assert_allclose(np.asarray(o), np.asarray(r),
                                   rtol=1e-4, atol=1e-4)

    # Case 2: ragged row count (R=40 with tile_rows=16 -> grid of 3, masked tail).
    xs2, params2 = _make_case(k2, B=5, N=8, channels=32)
    out2 = jax.block_until_ready(layernorm_d8(xs2, params2, tile_rows=16))
    ref2 = layernorm_d8_reference(xs2, params2)
    for o, r in zip(out2, ref2):
        np.testing.assert_allclose(np.asarray(o), np.asarray(r),
                                   rtol=1e-4, atol=1e-4)

    print("KERNEL_OK")
</pallas_src>

<mosaic_0001>
module attributes {stable_mosaic.version = 11 : i64} {
  func.func @_layernorm_d8_kernel(%arg0: i32, %arg1: memref<16x4xf32, #tpu.memory_space<vmem>>, %arg2: memref<16x4xf32, #tpu.memory_space<vmem>>, %arg3: memref<16x4xf32, #tpu.memory_space<vmem>>, %arg4: memref<16x4xf32, #tpu.memory_space<vmem>>, %arg5: memref<16x16xf32, #tpu.memory_space<vmem>>, %arg6: memref<1x36xf32, #tpu.memory_space<vmem>>, %arg7: memref<16x4xf32, #tpu.memory_space<vmem>>, %arg8: memref<16x4xf32, #tpu.memory_space<vmem>>, %arg9: memref<16x4xf32, #tpu.memory_space<vmem>>, %arg10: memref<16x4xf32, #tpu.memory_space<vmem>>, %arg11: memref<16x16xf32, #tpu.memory_space<vmem>>) attributes {dimension_semantics = [#tpu.dimension_semantics<parallel>], iteration_bounds = array<i64: 1>, scalar_prefetch = 0 : i64, scratch_operands = 0 : i64, tpu.core_type = #tpu.core_type<tc>, window_params = [{transform_indices = @transform_0, window_bounds = array<i64: 16, 4>}, {transform_indices = @transform_1, window_bounds = array<i64: 16, 4>}, {transform_indices = @transform_2, window_bounds = array<i64: 16, 4>}, {transform_indices = @transform_3, window_bounds = array<i64: 16, 4>}, {transform_indices = @transform_4, window_bounds = array<i64: 16, 16>}, {pipeline_mode = #tpu.pipeline_mode<synchronous>, transform_indices = @transform_5, window_bounds = array<i64: 1, 36>}, {transform_indices = @transform_6, window_bounds = array<i64: 16, 4>}, {transform_indices = @transform_7, window_bounds = array<i64: 16, 4>}, {transform_indices = @transform_8, window_bounds = array<i64: 16, 4>}, {transform_indices = @transform_9, window_bounds = array<i64: 16, 4>}, {transform_indices = @transform_10, window_bounds = array<i64: 16, 16>}]} {
    %c0 = arith.constant 0 : index
    %c0_0 = arith.constant 0 : index
    %0 = vector.load %arg1[%c0, %c0_0] : memref<16x4xf32, #tpu.memory_space<vmem>>, vector<16x4xf32>
    %c0_1 = arith.constant 0 : index
    %c0_2 = arith.constant 0 : index
    %1 = vector.load %arg2[%c0_1, %c0_2] : memref<16x4xf32, #tpu.memory_space<vmem>>, vector<16x4xf32>
    %c0_3 = arith.constant 0 : index
    %c0_4 = arith.constant 0 : index
    %2 = vector.load %arg3[%c0_3, %c0_4] : memref<16x4xf32, #tpu.memory_space<vmem>>, vector<16x4xf32>
    %c0_5 = arith.constant 0 : index
    %c0_6 = arith.constant 0 : index
    %3 = vector.load %arg4[%c0_5, %c0_6] : memref<16x4xf32, #tpu.memory_space<vmem>>, vector<16x4xf32>
    %c0_7 = arith.constant 0 : index
    %c0_8 = arith.constant 0 : index
    %4 = vector.load %arg5[%c0_7, %c0_8] : memref<16x16xf32, #tpu.memory_space<vmem>>, vector<16x16xf32>
    %cst = arith.constant dense<0.000000e+00> : vector<16xf32>
    %5 = vector.multi_reduction <add>, %0, %cst [1] : vector<16x4xf32> to vector<16xf32>
    %6 = vector.shape_cast %5 : vector<16xf32> to vector<16x1xf32>
    %cst_9 = arith.constant 4.000000e+00 : f32
    %7 = vector.broadcast %cst_9 : f32 to vector<16x1xf32>
    %8 = arith.divf %6, %7 : vector<16x1xf32>
    %9 = vector.broadcast %8 : vector<16x1xf32> to vector<16x4xf32>
    %10 = arith.subf %0, %9 : vector<16x4xf32>
    %11 = arith.mulf %10, %10 : vector<16x4xf32>
    %cst_10 = arith.constant dense<0.000000e+00> : vector<16xf32>
    %12 = vector.multi_reduction <add>, %11, %cst_10 [1] : vector<16x4xf32> to vector<16xf32>
    %13 = vector.shape_cast %12 : vector<16xf32> to vector<16x1xf32>
    %cst_11 = arith.constant 4.000000e+00 : f32
    %14 = vector.broadcast %cst_11 : f32 to vector<16x1xf32>
    %15 = arith.divf %13, %14 : vector<16x1xf32>
    %cst_12 = arith.constant dense<0.000000e+00> : vector<16xf32>
    %16 = vector.multi_reduction <add>, %1, %cst_12 [1] : vector<16x4xf32> to vector<16xf32>
    %17 = vector.shape_cast %16 : vector<16xf32> to vector<16x1xf32>
    %cst_13 = arith.constant 4.000000e+00 : f32
    %18 = vector.broadcast %cst_13 : f32 to vector<16x1xf32>
    %19 = arith.divf %17, %18 : vector<16x1xf32>
    %20 = vector.broadcast %19 : vector<16x1xf32> to vector<16x4xf32>
    %21 = arith.subf %1, %20 : vector<16x4xf32>
    %22 = arith.mulf %21, %21 : vector<16x4xf32>
    %cst_14 = arith.constant dense<0.000000e+00> : vector<16xf32>
    %23 = vector.multi_reduction <add>, %22, %cst_14 [1] : vector<16x4xf32> to vector<16xf32>
    %24 = vector.shape_cast %23 : vector<16xf32> to vector<16x1xf32>
    %cst_15 = arith.constant 4.000000e+00 : f32
    %25 = vector.broadcast %cst_15 : f32 to vector<16x1xf32>
    %26 = arith.divf %24, %25 : vector<16x1xf32>
    %cst_16 = arith.constant dense<0.000000e+00> : vector<16xf32>
    %27 = vector.multi_reduction <add>, %2, %cst_16 [1] : vector<16x4xf32> to vector<16xf32>
    %28 = vector.shape_cast %27 : vector<16xf32> to vector<16x1xf32>
    %cst_17 = arith.constant 4.000000e+00 : f32
    %29 = vector.broadcast %cst_17 : f32 to vector<16x1xf32>
    %30 = arith.divf %28, %29 : vector<16x1xf32>
    %31 = vector.broadcast %30 : vector<16x1xf32> to vector<16x4xf32>
    %32 = arith.subf %2, %31 : vector<16x4xf32>
    %33 = arith.mulf %32, %32 : vector<16x4xf32>
    %cst_18 = arith.constant dense<0.000000e+00> : vector<16xf32>
    %34 = vector.multi_reduction <add>, %33, %cst_18 [1] : vector<16x4xf32> to vector<16xf32>
    %35 = vector.shape_cast %34 : vector<16xf32> to vector<16x1xf32>
    %cst_19 = arith.constant 4.000000e+00 : f32
    %36 = vector.broadcast %cst_19 : f32 to vector<16x1xf32>
    %37 = arith.divf %35, %36 : vector<16x1xf32>
    %cst_20 = arith.constant dense<0.000000e+00> : vector<16xf32>
    %38 = vector.multi_reduction <add>, %3, %cst_20 [1] : vector<16x4xf32> to vector<16xf32>
    %39 = vector.shape_cast %38 : vector<16xf32> to vector<16x1xf32>
    %cst_21 = arith.constant 4.000000e+00 : f32
    %40 = vector.broadcast %cst_21 : f32 to vector<16x1xf32>
    %41 = arith.divf %39, %40 : vector<16x1xf32>
    %42 = vector.broadcast %41 : vector<16x1xf32> to vector<16x4xf32>
    %43 = arith.subf %3, %42 : vector<16x4xf32>
    %44 = arith.mulf %43, %43 : vector<16x4xf32>
    %cst_22 = arith.constant dense<0.000000e+00> : vector<16xf32>
    %45 = vector.multi_reduction <add>, %44, %cst_22 [1] : vector<16x4xf32> to vector<16xf32>
    %46 = vector.shape_cast %45 : vector<16xf32> to vector<16x1xf32>
    %cst_23 = arith.constant 4.000000e+00 : f32
    %47 = vector.broadcast %cst_23 : f32 to vector<16x1xf32>
    %48 = arith.divf %46, %47 : vector<16x1xf32>
    %49 = vector.extract_strided_slice %4 {offsets = [0, 0], sizes = [16, 8], strides = [1, 1]} : vector<16x16xf32> to vector<16x8xf32>
    %cst_24 = arith.constant dense<0.000000e+00> : vector<16xf32>
    %50 = vector.multi_reduction <add>, %49, %cst_24 [1] : vector<16x8xf32> to vector<16xf32>
    %51 = vector.shape_cast %50 : vector<16xf32> to vector<16x1xf32>
    %cst_25 = arith.constant 8.000000e+00 : f32
    %52 = vector.broadcast %cst_25 : f32 to vector<16x1xf32>
    %53 = arith.divf %51, %52 : vector<16x1xf32>
    %54 = vector.broadcast %53 : vector<16x1xf32> to vector<16x8xf32>
    %55 = arith.subf %49, %54 : vector<16x8xf32>
    %56 = arith.mulf %55, %55 : vector<16x8xf32>
    %cst_26 = arith.constant dense<0.000000e+00> : vector<16xf32>
    %57 = vector.multi_reduction <add>, %56, %cst_26 [1] : vector<16x8xf32> to vector<16xf32>
    %58 = vector.shape_cast %57 : vector<16xf32> to vector<16x1xf32>
    %cst_27 = arith.constant 8.000000e+00 : f32
    %59 = vector.broadcast %cst_27 : f32 to vector<16x1xf32>
    %60 = arith.divf %58, %59 : vector<16x1xf32>
    %61 = vector.extract_strided_slice %4 {offsets = [0, 8], sizes = [16, 8], strides = [1, 1]} : vector<16x16xf32> to vector<16x8xf32>
    %cst_28 = arith.constant dense<0.000000e+00> : vector<16xf32>
    %62 = vector.multi_reduction <add>, %61, %cst_28 [1] : vector<16x8xf32> to vector<16xf32>
    %63 = vector.shape_cast %62 : vector<16xf32> to vector<16x1xf32>
    %cst_29 = arith.constant 8.000000e+00 : f32
    %64 = vector.broadcast %cst_29 : f32 to vector<16x1xf32>
    %65 = arith.divf %63, %64 : vector<16x1xf32>
    %66 = vector.broadcast %65 : vector<16x1xf32> to vector<16x8xf32>
    %67 = arith.subf %61, %66 : vector<16x8xf32>
    %68 = arith.mulf %67, %67 : vector<16x8xf32>
    %cst_30 = arith.constant dense<0.000000e+00> : vector<16xf32>
    %69 = vector.multi_reduction <add>, %68, %cst_30 [1] : vector<16x8xf32> to vector<16xf32>
    %70 = vector.shape_cast %69 : vector<16xf32> to vector<16x1xf32>
    %cst_31 = arith.constant 8.000000e+00 : f32
    %71 = vector.broadcast %cst_31 : f32 to vector<16x1xf32>
    %72 = arith.divf %70, %71 : vector<16x1xf32>
    %73 = arith.addf %60, %72 : vector<16x1xf32>
    %cst_32 = arith.constant 5.000000e-01 : f32
    %74 = vector.broadcast %cst_32 : f32 to vector<16x1xf32>
    %75 = arith.mulf %74, %73 : vector<16x1xf32>
    %76 = arith.addf %15, %26 : vector<16x1xf32>
    %77 = arith.addf %76, %37 : vector<16x1xf32>
    %78 = arith.addf %77, %48 : vector<16x1xf32>
    %79 = arith.addf %78, %75 : vector<16x1xf32>
    %cst_33 = arith.constant 9.99999974E-6 : f32
    %80 = vector.broadcast %cst_33 : f32 to vector<16x1xf32>
    %81 = arith.addf %79, %80 : vector<16x1xf32>
    %82 = math.rsqrt %81 : vector<16x1xf32>
    %cst_34 = arith.constant 2.82842708 : f32
    %83 = vector.broadcast %cst_34 : f32 to vector<16x1xf32>
    %84 = arith.mulf %83, %82 : vector<16x1xf32>
    %c0_35 = arith.constant 0 : index
    %c0_36 = arith.constant 0 : index
    %85 = vector.load %arg6[%c0_35, %c0_36] : memref<1x36xf32, #tpu.memory_space<vmem>>, vector<1x36xf32>
    %86 = vector.extract_strided_slice %85 {offsets = [0, 0], sizes = [1, 4], strides = [1, 1]} : vector<1x36xf32> to vector<1x4xf32>
    %87 = vector.extract_strided_slice %85 {offsets = [0, 4], sizes = [1, 4], strides = [1, 1]} : vector<1x36xf32> to vector<1x4xf32>
    %88 = vector.extract_strided_slice %85 {offsets = [0, 8], sizes = [1, 4], strides = [1, 1]} : vector<1x36xf32> to vector<1x4xf32>
    %89 = vector.extract_strided_slice %85 {offsets = [0, 12], sizes = [1, 4], strides = [1, 1]} : vector<1x36xf32> to vector<1x4xf32>
    %90 = vector.extract_strided_slice %85 {offsets = [0, 16], sizes = [1, 4], strides = [1, 1]} : vector<1x36xf32> to vector<1x4xf32>
    %91 = vector.extract_strided_slice %85 {offsets = [0, 20], sizes = [1, 16], strides = [1, 1]} : vector<1x36xf32> to vector<1x16xf32>
    %92 = vector.broadcast %84 : vector<16x1xf32> to vector<16x4xf32>
    %93 = arith.mulf %10, %92 : vector<16x4xf32>
    %94 = vector.broadcast %86 : vector<1x4xf32> to vector<16x4xf32>
    %95 = arith.mulf %94, %93 : vector<16x4xf32>
    %96 = vector.broadcast %90 : vector<1x4xf32> to vector<16x4xf32>
    %97 = arith.addf %95, %96 : vector<16x4xf32>
    %c0_37 = arith.constant 0 : index
    %c0_38 = arith.constant 0 : index
    %98 = vector.load %arg7[%c0_37, %c0_38] : memref<16x4xf32, #tpu.memory_space<vmem>>, vector<16x4xf32>
    tpu.vector_store %arg7[%c0_37, %c0_38], %97 {strides = array<i32>} : memref<16x4xf32, #tpu.memory_space<vmem>>, vector<16x4xf32>,
    %99 = vector.broadcast %84 : vector<16x1xf32> to vector<16x4xf32>
    %100 = arith.mulf %21, %99 : vector<16x4xf32>
    %101 = vector.broadcast %87 : vector<1x4xf32> to vector<16x4xf32>
    %102 = arith.mulf %101, %100 : vector<16x4xf32>
    %c0_39 = arith.constant 0 : index
    %c0_40 = arith.constant 0 : index
    %103 = vector.load %arg8[%c0_39, %c0_40] : memref<16x4xf32, #tpu.memory_space<vmem>>, vector<16x4xf32>
    tpu.vector_store %arg8[%c0_39, %c0_40], %102 {strides = array<i32>} : memref<16x4xf32, #tpu.memory_space<vmem>>, vector<16x4xf32>,
    %104 = vector.broadcast %84 : vector<16x1xf32> to vector<16x4xf32>
    %105 = arith.mulf %32, %104 : vector<16x4xf32>
    %106 = vector.broadcast %88 : vector<1x4xf32> to vector<16x4xf32>
    %107 = arith.mulf %106, %105 : vector<16x4xf32>
    %c0_41 = arith.constant 0 : index
    %c0_42 = arith.constant 0 : index
    %108 = vector.load %arg9[%c0_41, %c0_42] : memref<16x4xf32, #tpu.memory_space<vmem>>, vector<16x4xf32>
    tpu.vector_store %arg9[%c0_41, %c0_42], %107 {strides = array<i32>} : memref<16x4xf32, #tpu.memory_space<vmem>>, vector<16x4xf32>,
    %109 = vector.broadcast %84 : vector<16x1xf32> to vector<16x4xf32>
    %110 = arith.mulf %43, %109 : vector<16x4xf32>
    %111 = vector.broadcast %89 : vector<1x4xf32> to vector<16x4xf32>
    %112 = arith.mulf %111, %110 : vector<16x4xf32>
    %c0_43 = arith.constant 0 : index
    %c0_44 = arith.constant 0 : index
    %113 = vector.load %arg10[%c0_43, %c0_44] : memref<16x4xf32, #tpu.memory_space<vmem>>, vector<16x4xf32>
    tpu.vector_store %arg10[%c0_43, %c0_44], %112 {strides = array<i32>} : memref<16x4xf32, #tpu.memory_space<vmem>>, vector<16x4xf32>,
    %114 = tpu.concatenate %55, %67 in 1 : vector<16x8xf32>, vector<16x8xf32> -> vector<16x16xf32>
    %115 = vector.broadcast %84 : vector<16x1xf32> to vector<16x16xf32>
    %116 = arith.mulf %114, %115 : vector<16x16xf32>
    %117 = vector.broadcast %91 : vector<1x16xf32> to vector<16x16xf32>
    %118 = arith.mulf %117, %116 : vector<16x16xf32>
    %c0_45 = arith.constant 0 : index
    %c0_46 = arith.constant 0 : index
    %119 = vector.load %arg11[%c0_45, %c0_46] : memref<16x16xf32, #tpu.memory_space<vmem>>, vector<16x16xf32>
    tpu.vector_store %arg11[%c0_45, %c0_46], %118 {strides = array<i32>} : memref<16x16xf32, #tpu.memory_space<vmem>>, vector<16x16xf32>,
    return
  }
  func.func @transform_0(%arg0: i32) -> (i32, i32) {
    %c0_i32 = arith.constant 0 : i32
    %c0_i32_0 = arith.constant 0 : i32
    return %arg0, %c0_i32 : i32, i32
  }
  func.func @transform_1(%arg0: i32) -> (i32, i32) {
    %c0_i32 = arith.constant 0 : i32
    %c0_i32_0 = arith.constant 0 : i32
    return %arg0, %c0_i32 : i32, i32
  }
  func.func @transform_2(%arg0: i32) -> (i32, i32) {
    %c0_i32 = arith.constant 0 : i32
    %c0_i32_0 = arith.constant 0 : i32
    return %arg0, %c0_i32 : i32, i32
  }
  func.func @transform_3(%arg0: i32) -> (i32, i32) {
    %c0_i32 = arith.constant 0 : i32
    %c0_i32_0 = arith.constant 0 : i32
    return %arg0, %c0_i32 : i32, i32
  }
  func.func @transform_4(%arg0: i32) -> (i32, i32) {
    %c0_i32 = arith.constant 0 : i32
    %c0_i32_0 = arith.constant 0 : i32
    return %arg0, %c0_i32 : i32, i32
  }
  func.func @transform_5(%arg0: i32) -> (i32, i32) {
    %c0_i32 = arith.constant 0 : i32
    %c0_i32_0 = arith.constant 0 : i32
    %c0_i32_1 = arith.constant 0 : i32
    return %c0_i32, %c0_i32_0 : i32, i32
  }
  func.func @transform_6(%arg0: i32) -> (i32, i32) {
    %c0_i32 = arith.constant 0 : i32
    %c0_i32_0 = arith.constant 0 : i32
    return %arg0, %c0_i32 : i32, i32
  }
  func.func @transform_7(%arg0: i32) -> (i32, i32) {
    %c0_i32 = arith.constant 0 : i32
    %c0_i32_0 = arith.constant 0 : i32
    return %arg0, %c0_i32 : i32, i32
  }
  func.func @transform_8(%arg0: i32) -> (i32, i32) {
    %c0_i32 = arith.constant 0 : i32
    %c0_i32_0 = arith.constant 0 : i32
    return %arg0, %c0_i32 : i32, i32
  }
  func.func @transform_9(%arg0: i32) -> (i32, i32) {
    %c0_i32 = arith.constant 0 : i32
    %c0_i32_0 = arith.constant 0 : i32
    return %arg0, %c0_i32 : i32, i32
  }
  func.func @transform_10(%arg0: i32) -> (i32, i32) {
    %c0_i32 = arith.constant 0 : i32
    %c0_i32_0 = arith.constant 0 : i32
    return %arg0, %c0_i32 : i32, i32
  }
}

</mosaic_0001>

<llo_original>
// kernel: tpu_custom_call.1
$region0: #{tpu_custom_call.1}
  #allocation0 [shape = 'u32[]', space=smem, size = 0x4, offset = 0x4, fixed_abs, tag = 'smem constant byte address 0x4 - core index']
  #allocation1 [shape = 'u32[72,128]{1,0:T(1,128)}', space=vmem, size = 0x9000, scoped, tag = 'internal scratch']
  %s0 = inlined_call_operand.vmem [shape: f32[16,4], index: 0, kind: input, shape index: {}]
  %s1 = inlined_call_operand.vmem [shape: f32[16,4], index: 1, kind: input, shape index: {}]
  %s2 = inlined_call_operand.vmem [shape: f32[16,4], index: 2, kind: input, shape index: {}]
  %s3 = inlined_call_operand.vmem [shape: f32[16,4], index: 3, kind: input, shape index: {}]
  %s4 = inlined_call_operand.vmem [shape: f32[16,16], index: 4, kind: input, shape index: {}]
  %s5 = inlined_call_operand.vmem [shape: f32[1,36], index: 5, kind: input, shape index: {}]
  %s6 = inlined_call_operand.vmem [shape: f32[16,4], index: 6, kind: output, shape index: {0}]
  %s7 = inlined_call_operand.vmem [shape: f32[16,4], index: 7, kind: output, shape index: {1}]
  %s8 = inlined_call_operand.vmem [shape: f32[16,4], index: 8, kind: output, shape index: {2}]
  %s9 = inlined_call_operand.vmem [shape: f32[16,4], index: 9, kind: output, shape index: {3}]
  %s10 = inlined_call_operand.hbm [shape: f32[16,16], index: 10, kind: output, shape index: {4}]
  %11 = xla_tuple %s6, %s7, %s8, %s9, %s10
  %s12 = sld [smem:[#allocation0]]
  $region66: #{tpu_custom_call.1} parent=0
    _
  %s14 = ssub.s32 1, %s12
  %s15 = scalar_select 0, %s14, %s12
  $region1: #{tpu_custom_call.1} parent=0
    #allocation2 [shape = 'u8[8192]{0}', space=vmem, size = 0x2000, scoped, tag = 'output window, operand 4, single buffered']
    #allocation3 [shape = 's32[1]{0}', space=sflag, size = 0x4, scoped, tag = 'scoped memory for tpu_custom_call.1']
    %16 = vsyncpa [#allocation3], 0
    // Predicated region
    $region2: #{tpu_custom_call.1} parent=1 // pred_check
      _
    $region3: #{tpu_custom_call.1} parent=1 // pred_check_branch
      %18 = sbr.rel (0) target = $region5
    $region4: #{tpu_custom_call.1} parent=1 // pred_region
      _
    $region5: #{tpu_custom_call.1} parent=1 // pred_fallthru
      _
    // Predicated region
    $region6: #{tpu_custom_call.1} parent=1 // pred_check
      _
    $region7: #{tpu_custom_call.1} parent=1 // pred_check_branch
      %20 = sbr.rel (0) target = $region9
    $region8: #{tpu_custom_call.1} parent=1 // pred_region
      _
    $region9: #{tpu_custom_call.1} parent=1 // pred_fallthru
      _
    // Predicated region
    $region10: #{tpu_custom_call.1} parent=1 // pred_check
      _
    $region11: #{tpu_custom_call.1} parent=1 // pred_check_branch
      %22 = sbr.rel (0) target = $region13
    $region12: #{tpu_custom_call.1} parent=1 // pred_region
      _
    $region13: #{tpu_custom_call.1} parent=1 // pred_fallthru
      _
    // Predicated region
    $region14: #{tpu_custom_call.1} parent=1 // pred_check
      _
    $region15: #{tpu_custom_call.1} parent=1 // pred_check_branch
      %24 = sbr.rel (0) target = $region17
    $region16: #{tpu_custom_call.1} parent=1 // pred_region
      _
    $region17: #{tpu_custom_call.1} parent=1 // pred_fallthru
      _
    // Predicated region
    $region18: #{tpu_custom_call.1} parent=1 // pred_check
      _
    $region19: #{tpu_custom_call.1} parent=1 // pred_check_branch
      %26 = sbr.rel (0) target = $region21
    $region20: #{tpu_custom_call.1} parent=1 // pred_region
      _
    $region21: #{tpu_custom_call.1} parent=1 // pred_fallthru
      _
    // Predicated region
    $region22: #{tpu_custom_call.1} parent=1 // pred_check
      _
    $region23: #{tpu_custom_call.1} parent=1 // pred_check_branch
      %28 = sbr.rel (0) target = $region25
    $region24: #{tpu_custom_call.1} parent=1 // pred_region
      _
    $region25: #{tpu_custom_call.1} parent=1 // pred_fallthru
      _
    %v29 = vld [vmem:[%s0] sm:$0xff]
    %v30 = vld [vmem:[%s0 + $0x8] sm:$0xff]
    %v31 = vld [vmem:[%s1] sm:$0xff]
    %v32 = vld [vmem:[%s1 + $0x8] sm:$0xff]
    %v33 = vld [vmem:[%s2] sm:$0xff]
    %v34 = vld [vmem:[%s2 + $0x8] sm:$0xff]
    %v35 = vld [vmem:[%s3] sm:$0xff]
    %v36 = vld [vmem:[%s3 + $0x8] sm:$0xff]
    %v37 = vld [vmem:[%s4] sm:$0xff]
    %v38 = vld [vmem:[%s4 + $0x8] sm:$0xff]
    %vm39 = vcmask 31744
    %v40 = vsel %vm39, %v29, 0.0
    %41 = vadd.xlane.f32.xlu0 %v40
    %v42 = vpop.xlane.xlu0 %41
    %v43 = vsel %vm39, %v30, 0.0
    %44 = vadd.xlane.f32.xlu0 %v43
    %v45 = vpop.xlane.xlu0 %44
    %v46 = vrcp.pop 4.0
    %v47 = vmul.f32 4.0, %v46
    %v48 = vsub.f32 1.0, %v47
    %v49 = vmul.f32 %v46, %v48
    %v50 = vadd.f32 %v46, %v49
    %vm51 = vweird.f32 %v46
    %v52 = vsel %vm51, %v46, %v50
    %v53 = vmul.f32 %v42, %v52
    %v54 = vmul.f32 %v45, %v52
    %v55 = vsub.f32 %v29, %v53
    %v56 = vsub.f32 %v30, %v54
    %v57 = vmul.f32 %v55, %v55
    %v58 = vmul.f32 %v56, %v56
    %v59 = vsel %vm39, %v57, 0.0
    %60 = vadd.xlane.f32.xlu0 %v59
    %v61 = vpop.xlane.xlu0 %60
    %v62 = vsel %vm39, %v58, 0.0
    %63 = vadd.xlane.f32.xlu0 %v62
    %v64 = vpop.xlane.xlu0 %63
    %v65 = vmul.f32 %v61, %v52
    %v66 = vmul.f32 %v64, %v52
    %v67 = vsel %vm39, %v31, 0.0
    %68 = vadd.xlane.f32.xlu0 %v67
    %v69 = vpop.xlane.xlu0 %68
    %v70 = vsel %vm39, %v32, 0.0
    %71 = vadd.xlane.f32.xlu0 %v70
    %v72 = vpop.xlane.xlu0 %71
    %v73 = vmul.f32 %v69, %v52
    %v74 = vmul.f32 %v72, %v52
    %v75 = vsub.f32 %v31, %v73
    %v76 = vsub.f32 %v32, %v74
    %v77 = vmul.f32 %v75, %v75
    %v78 = vmul.f32 %v76, %v76
    %v79 = vsel %vm39, %v77, 0.0
    %80 = vadd.xlane.f32.xlu0 %v79
    %v81 = vpop.xlane.xlu0 %80
    %v82 = vsel %vm39, %v78, 0.0
    %83 = vadd.xlane.f32.xlu0 %v82
    %v84 = vpop.xlane.xlu0 %83
    %v85 = vmul.f32 %v81, %v52
    %v86 = vmul.f32 %v84, %v52
    %v87 = vsel %vm39, %v33, 0.0
    %88 = vadd.xlane.f32.xlu0 %v87
    %v89 = vpop.xlane.xlu0 %88
    %v90 = vsel %vm39, %v34, 0.0
    %91 = vadd.xlane.f32.xlu0 %v90
    %v92 = vpop.xlane.xlu0 %91
    %v93 = vmul.f32 %v89, %v52
    %v94 = vmul.f32 %v92, %v52
    %v95 = vsub.f32 %v33, %v93
    %v96 = vsub.f32 %v34, %v94
    %v97 = vmul.f32 %v95, %v95
    %v98 = vmul.f32 %v96, %v96
    %v99 = vsel %vm39, %v97, 0.0
    %100 = vadd.xlane.f32.xlu0 %v99
    %v101 = vpop.xlane.xlu0 %100
    %v102 = vsel %vm39, %v98, 0.0
    %103 = vadd.xlane.f32.xlu0 %v102
    %v104 = vpop.xlane.xlu0 %103
    %v105 = vmul.f32 %v101, %v52
    %v106 = vmul.f32 %v104, %v52
    %v107 = vsel %vm39, %v35, 0.0
    %108 = vadd.xlane.f32.xlu0 %v107
    %v109 = vpop.xlane.xlu0 %108
    %v110 = vsel %vm39, %v36, 0.0
    %111 = vadd.xlane.f32.xlu0 %v110
    %v112 = vpop.xlane.xlu0 %111
    %v113 = vmul.f32 %v109, %v52
    %v114 = vmul.f32 %v112, %v52
    %v115 = vsub.f32 %v35, %v113
    %v116 = vsub.f32 %v36, %v114
    %v117 = vmul.f32 %v115, %v115
    %v118 = vmul.f32 %v116, %v116
    %v119 = vsel %vm39, %v117, 0.0
    %120 = vadd.xlane.f32.xlu0 %v119
    %v121 = vpop.xlane.xlu0 %120
    %v122 = vsel %vm39, %v118, 0.0
    %123 = vadd.xlane.f32.xlu0 %v122
    %v124 = vpop.xlane.xlu0 %123
    %v125 = vmul.f32 %v121, %v52
    %v126 = vmul.f32 %v124, %v52
    %vm127 = vcmask 64512
    %v128 = vsel %vm127, %v37, 0.0
    %129 = vadd.xlane.f32.xlu0 %v128
    %v130 = vpop.xlane.xlu0 %129
    %v131 = vsel %vm127, %v38, 0.0
    %132 = vadd.xlane.f32.xlu0 %v131
    %v133 = vpop.xlane.xlu0 %132
    %v134 = vrcp.pop 8.0
    %v135 = vmul.f32 8.0, %v134
    %v136 = vsub.f32 1.0, %v135
    %v137 = vmul.f32 %v134, %v136
    %v138 = vadd.f32 %v134, %v137
    %vm139 = vweird.f32 %v134
    %v140 = vsel %vm139, %v134, %v138
    %v141 = vmul.f32 %v130, %v140
    %v142 = vmul.f32 %v133, %v140
    %v143 = vsub.f32 %v37, %v141
    %v144 = vsub.f32 %v38, %v142
    %v145 = vmul.f32 %v143, %v143
    %v146 = vmul.f32 %v144, %v144
    %v147 = vsel %vm127, %v145, 0.0
    %148 = vadd.xlane.f32.xlu0 %v147
    %v149 = vpop.xlane.xlu0 %148
    %v150 = vsel %vm127, %v146, 0.0
    %151 = vadd.xlane.f32.xlu0 %v150
    %v152 = vpop.xlane.xlu0 %151
    %v153 = vmul.f32 %v149, %v140
    %v154 = vmul.f32 %v152, %v140
    %157 = vrot.lane.b32.xlu0 %v37, 120
    %v158 = vpop.permute.xlu0 %157
    %159 = vrot.lane.b32.xlu0 %v38, 120
    %v160 = vpop.permute.xlu0 %159
    %v163 = vsel %vm127, %v158, 0.0
    %164 = vadd.xlane.f32.xlu0 %v163
    %v165 = vpop.xlane.xlu0 %164
    %v166 = vsel %vm127, %v160, 0.0
    %167 = vadd.xlane.f32.xlu0 %v166
    %v168 = vpop.xlane.xlu0 %167
    %v169 = vmul.f32 %v165, %v140
    %v170 = vmul.f32 %v168, %v140
    %v171 = vsub.f32 %v37, %v169
    %v172 = vsub.f32 %v38, %v170
    %v173 = vmul.f32 %v171, %v171
    %v174 = vmul.f32 %v172, %v172
    %177 = vrot.lane.b32.xlu0 %v173, 120
    %v178 = vpop.permute.xlu0 %177
    %179 = vrot.lane.b32.xlu0 %v174, 120
    %v180 = vpop.permute.xlu0 %179
    %v183 = vsel %vm127, %v178, 0.0
    %184 = vadd.xlane.f32.xlu0 %v183
    %v185 = vpop.xlane.xlu0 %184
    %v186 = vsel %vm127, %v180, 0.0
    %187 = vadd.xlane.f32.xlu0 %v186
    %v188 = vpop.xlane.xlu0 %187
    %v189 = vmul.f32 %v185, %v140
    %v190 = vmul.f32 %v188, %v140
    %v191 = vadd.f32 %v153, %v189
    %v192 = vadd.f32 %v154, %v190
    %v193 = vmul.f32 %v191, 0.5
    %v194 = vmul.f32 %v192, 0.5
    %v195 = vadd.f32 %v65, %v85
    %v196 = vadd.f32 %v66, %v86
    %v197 = vadd.f32 %v195, %v105
    %v198 = vadd.f32 %v196, %v106
    %v199 = vadd.f32 %v197, %v125
    %v200 = vadd.f32 %v198, %v126
    %v201 = vadd.f32 %v199, %v193
    %v202 = vadd.f32 %v200, %v194
    %v203 = vadd.f32 %v201, 1e-05
    %v204 = vadd.f32 %v202, 1e-05
    %v205 = vrsqrt.pop %v203
    %v206 = vmul.f32 %v205, %v203
    %v207 = vmul.f32 %v206, %v205
    %v208 = vmul.f32 0.5, %v207
    %v209 = vsub.f32 1.5, %v208
    %v210 = vmul.f32 %v205, %v209
    %vm211 = vweird.f32 %v203
    %vm212 = vweird.f32 %v205
    %vm213 = vmor %vm211, %vm212
    %v214 = vsel %vm213, %v205, %v210
    %v215 = vrsqrt.pop %v204
    %v216 = vmul.f32 %v215, %v204
    %v217 = vmul.f32 %v216, %v215
    %v218 = vmul.f32 0.5, %v217
    %v219 = vsub.f32 1.5, %v218
    %v220 = vmul.f32 %v215, %v219
    %vm221 = vweird.f32 %v204
    %vm222 = vweird.f32 %v215
    %vm223 = vmor %vm221, %vm222
    %v224 = vsel %vm223, %v215, %v220
    %v225 = vmul.f32 %v214, 2.828427
    %v226 = vmul.f32 %v224, 2.828427
    %v227 = vld [vmem:[%s5] sm:$0x1]
    %v228 = vmul.f32 %v55, %v225
    %v229 = vmul.f32 %v56, %v226
    %v231 = vperm.slane %v227, 0
    %v233 = vmul.f32 %v231, %v228
    %v234 = vmul.f32 %v231, %v229
    %235 = vrot.lane.b32.xlu0 %v231, 112
    %v236 = vpop.permute.xlu0 %235
    %v238 = vadd.f32 %v233, %v236
    %v239 = vadd.f32 %v234, %v236
    %240 = vst.msk [vmem:[%s6] sm:$0xff] %vm39, %v238
    %241 = vst.msk [vmem:[%s6 + $0x8] sm:$0xff] %vm39, %v239
    %v242 = vmul.f32 %v75, %v225
    %v243 = vmul.f32 %v76, %v226
    %246 = vrot.lane.b32.xlu0 %v242, 4
    %v247 = vpop.permute.xlu0 %246
    %248 = vrot.lane.b32.xlu0 %v243, 4
    %v249 = vpop.permute.xlu0 %248
    %v252 = vmul.f32 %v231, %v247
    %v253 = vmul.f32 %v231, %v249
    %256 = vrot.lane.b32.xlu0 %v252, 124
    %v257 = vpop.permute.xlu0 %256
    %258 = vrot.lane.b32.xlu0 %v253, 124
    %v259 = vpop.permute.xlu0 %258
    %262 = vst.msk [vmem:[%s7] sm:$0xff] %vm39, %v257
    %263 = vst.msk [vmem:[%s7 + $0x8] sm:$0xff] %vm39, %v259
    %v264 = vmul.f32 %v95, %v225
    %v265 = vmul.f32 %v96, %v226
    %268 = vrot.lane.b32.xlu0 %v264, 8
    %v269 = vpop.permute.xlu0 %268
    %270 = vrot.lane.b32.xlu0 %v265, 8
    %v271 = vpop.permute.xlu0 %270
    %v274 = vmul.f32 %v231, %v269
    %v275 = vmul.f32 %v231, %v271
    %278 = vrot.lane.b32.xlu0 %v274, 120
    %v279 = vpop.permute.xlu0 %278
    %280 = vrot.lane.b32.xlu0 %v275, 120
    %v281 = vpop.permute.xlu0 %280
    %284 = vst.msk [vmem:[%s8] sm:$0xff] %vm39, %v279
    %285 = vst.msk [vmem:[%s8 + $0x8] sm:$0xff] %vm39, %v281
    %v286 = vmul.f32 %v115, %v225
    %v287 = vmul.f32 %v116, %v226
    %290 = vrot.lane.b32.xlu0 %v286, 12
    %v291 = vpop.permute.xlu0 %290
    %292 = vrot.lane.b32.xlu0 %v287, 12
    %v293 = vpop.permute.xlu0 %292
    %v296 = vmul.f32 %v231, %v291
    %v297 = vmul.f32 %v231, %v293
    %300 = vrot.lane.b32.xlu0 %v296, 116
    %v301 = vpop.permute.xlu0 %300
    %302 = vrot.lane.b32.xlu0 %v297, 116
    %v303 = vpop.permute.xlu0 %302
    %306 = vst.msk [vmem:[%s9] sm:$0xff] %vm39, %v301
    %307 = vst.msk [vmem:[%s9 + $0x8] sm:$0xff] %vm39, %v303
    %v308 = vsel %vm127, %v143, %v171
    %v309 = vsel %vm127, %v144, %v172
    %v310 = vmul.f32 %v308, %v225
    %v311 = vmul.f32 %v309, %v226
    %314 = vrot.lane.b32.xlu0 %v310, 20
    %v315 = vpop.permute.xlu0 %314
    %316 = vrot.lane.b32.xlu0 %v311, 20
    %v317 = vpop.permute.xlu0 %316
    %v320 = vmul.f32 %v231, %v315
    %v321 = vmul.f32 %v231, %v317
    %324 = vrot.lane.b32.xlu0 %v320, 108
    %v325 = vpop.permute.xlu0 %324
    %326 = vrot.lane.b32.xlu0 %v321, 108
    %v327 = vpop.permute.xlu0 %326
    %vm330 = vcmask 130048
    %331 = vst.msk [vmem:[#allocation2] sm:$0xff] %vm330, %v325
    %332 = vst.msk [vmem:[#allocation2 + $0x8] sm:$0xff] %vm330, %v327
    // Predicated region
    $region26: #{tpu_custom_call.1} parent=1 // pred_check
      _
    $region27: #{tpu_custom_call.1} parent=1 // pred_check_branch
      %334 = sbr.rel (0) target = $region29
    $region28: #{tpu_custom_call.1} parent=1 // pred_region
      _
    $region29: #{tpu_custom_call.1} parent=1 // pred_fallthru
      _
    // Predicated region
    $region30: #{tpu_custom_call.1} parent=1 // pred_check
      _
    $region31: #{tpu_custom_call.1} parent=1 // pred_check_branch
      %336 = sbr.rel (0) target = $region33
    $region32: #{tpu_custom_call.1} parent=1 // pred_region
      _
    $region33: #{tpu_custom_call.1} parent=1 // pred_fallthru
      _
    // Predicated region
    $region34: #{tpu_custom_call.1} parent=1 // pred_check
      _
    $region35: #{tpu_custom_call.1} parent=1 // pred_check_branch
      %338 = sbr.rel (0) target = $region37
    $region36: #{tpu_custom_call.1} parent=1 // pred_region
      _
    $region37: #{tpu_custom_call.1} parent=1 // pred_fallthru
      _
    // Predicated region
    $region38: #{tpu_custom_call.1} parent=1 // pred_check
      _
    $region39: #{tpu_custom_call.1} parent=1 // pred_check_branch
      %340 = sbr.rel (0) target = $region41
    $region40: #{tpu_custom_call.1} parent=1 // pred_region
      _
    $region41: #{tpu_custom_call.1} parent=1 // pred_fallthru
      _
    // Predicated region
    $region42: #{tpu_custom_call.1} parent=1 // pred_check
      _
    $region43: #{tpu_custom_call.1} parent=1 // pred_check_branch
      %342 = sbr.rel (0) target = $region45
    $region44: #{tpu_custom_call.1} parent=1 // pred_region
      %344 = vsyncadd [#allocation3], 0
      %s345 = sshll.u32 [#allocation2], 4
      %s346 = int_to_ptr.vmem [resolvable:$true] %s345
      %s347 = sshll.u32 %s10, 4
      %s348 = int_to_ptr.hbm [resolvable:$true] %s347
      %353 = dma.vmem_to_hbm [thread:$0]  %s346, 256, %s348, [#allocation3], 128, 128, 8
    $region45: #{tpu_custom_call.1} parent=1 // pred_fallthru
      _
    // Predicated region
    $region46: #{tpu_custom_call.1} parent=1 // pred_check
      _
    $region47: #{tpu_custom_call.1} parent=1 // pred_check_branch
      %355 = sbr.rel (0) target = $region49
    $region48: #{tpu_custom_call.1} parent=1 // pred_region
      _
    $region49: #{tpu_custom_call.1} parent=1 // pred_fallthru
      _
    // Predicated region
    $region50: #{tpu_custom_call.1} parent=1 // pred_check
      _
    $region51: #{tpu_custom_call.1} parent=1 // pred_check_branch
      %357 = sbr.rel (0) target = $region53
    $region52: #{tpu_custom_call.1} parent=1 // pred_region
      _
    $region53: #{tpu_custom_call.1} parent=1 // pred_fallthru
      _
    // Predicated region
    $region54: #{tpu_custom_call.1} parent=1 // pred_check
      _
    $region55: #{tpu_custom_call.1} parent=1 // pred_check_branch
      %359 = sbr.rel (0) target = $region57
    $region56: #{tpu_custom_call.1} parent=1 // pred_region
      _
    $region57: #{tpu_custom_call.1} parent=1 // pred_fallthru
      _
    // Predicated region
    $region58: #{tpu_custom_call.1} parent=1 // pred_check
      _
    $region59: #{tpu_custom_call.1} parent=1 // pred_check_branch
      %361 = sbr.rel (0) target = $region61
    $region60: #{tpu_custom_call.1} parent=1 // pred_region
      _
    $region61: #{tpu_custom_call.1} parent=1 // pred_fallthru
      _
    // Predicated region
    $region62: #{tpu_custom_call.1} parent=1 // pred_check
      _
    $region63: #{tpu_custom_call.1} parent=1 // pred_check_branch
      %363 = sbr.rel (0) target = $region65
    $region64: #{tpu_custom_call.1} parent=1 // pred_region
      %365 = dma.done [#allocation3], 256
    $region65: #{tpu_custom_call.1} parent=1 // pred_fallthru
      _
    %366 = vsyncpa [#allocation3], 1

</llo_original>
